<compile_context>
chip_gen: v6e
topology: v6e:2x2x1
jax: 0.10.0
libtpu: 0.0.40
codegen_flags: <defaults>
</compile_context>

<pallas_src>
import functools

import jax
import jax.numpy as jnp
from jax import lax
from jax.experimental import pallas as pl
from jax.experimental.pallas import tpu as pltpu

NUM_GROUPS = 32
EPS = 1e-5                       # torch nn.GroupNorm default (wrapper doesn't forward its eps)
ACT_DTYPE = jnp.bfloat16         # activation dtype in HBM (x, h, shortcut)
MATMUL_DTYPE = jnp.bfloat16      # MXU operand dtype (accumulation stays f32)
INTER_DTYPE = jnp.bfloat16       # dtype of the conv1 activation written to HBM


# ---------------------------------------------------------------------------
# Generation-aware VMEM budget.
# ---------------------------------------------------------------------------
def _vmem_capacity_bytes():
    try:
        info = pltpu.get_tpu_info()
        for name in ("vmem_capacity_bytes", "vmem_size_bytes", "vmem_bytes"):
            v = getattr(info, name, None)
            if v:
                return int(v)
    except Exception:
        pass
    return 64 * 1024 * 1024      # conservative fallback (v7x per-core VMEM)


_VMEM_CAPACITY = _vmem_capacity_bytes()
VMEM_LIMIT_BYTES = (3 * _VMEM_CAPACITY) // 4    # ~96 MiB on v5e/v6e, ~48 MiB on v7x
TILE_BUDGET_BYTES = _VMEM_CAPACITY // 2         # ~64 MiB on v5e/v6e, ~32 MiB on v7x


# ---------------------------------------------------------------------------
# Kernel A: per-tile per-channel GroupNorm partial statistics of x.
# Grid (B, H/th), both axes parallel; finalization is a tiny jnp epilogue.
# ---------------------------------------------------------------------------
def _gn_partial_stats_kernel(x_ref, stats_ref):
    x = x_ref[0].astype(jnp.float32)                     # (th, W, C)
    th, w, c = x.shape
    x2 = x.reshape(th * w, c)
    s = jnp.sum(x2, axis=0, keepdims=True)               # (1, C)
    ssq = jnp.sum(x2 * x2, axis=0, keepdims=True)        # (1, C)
    stats_ref[0, 0] = jnp.concatenate([s, ssq], axis=0)  # (2, C)


def gn_partial_stats(x_nhwc, *, th):
    B, H, W, C = x_nhwc.shape
    assert H % th == 0
    nH = H // th
    return pl.pallas_call(
        _gn_partial_stats_kernel,
        out_shape=jax.ShapeDtypeStruct((B, nH, 2, C), jnp.float32),
        grid_spec=pltpu.PrefetchScalarGridSpec(
            num_scalar_prefetch=0,
            grid=(B, nH),
            in_specs=[pl.BlockSpec((1, th, W, C), lambda b, i: (b, i, 0, 0))],
            out_specs=pl.BlockSpec((1, 1, 2, C), lambda b, i: (b, i, 0, 0)),
        ),
        compiler_params=pltpu.CompilerParams(
            dimension_semantics=("parallel", "parallel"),
            vmem_limit_bytes=VMEM_LIMIT_BYTES),
    )(x_nhwc)


def gn_scale_shift_from_partials(partials, gamma, beta, n_per_group):
    """O(B*C) finalize: group-reduce partial sums -> per-channel (scale, shift)."""
    B = partials.shape[0]
    C = partials.shape[-1]
    cg = C // NUM_GROUPS
    tot = jnp.sum(partials.astype(jnp.float32), axis=1)            # (B, 2, C)
    gsum = tot[:, 0].reshape(B, NUM_GROUPS, cg).sum(-1, keepdims=True)
    gsq = tot[:, 1].reshape(B, NUM_GROUPS, cg).sum(-1, keepdims=True)
    mean = gsum / n_per_group
    var = jnp.maximum(gsq / n_per_group - mean * mean, 0.0)
    rstd = lax.rsqrt(var + EPS)
    mean = jnp.broadcast_to(mean, (B, NUM_GROUPS, cg)).reshape(B, 1, C)
    rstd = jnp.broadcast_to(rstd, (B, NUM_GROUPS, cg)).reshape(B, 1, C)
    scale = gamma.reshape(1, 1, C).astype(jnp.float32) * rstd
    shift = beta.reshape(1, 1, C).astype(jnp.float32) - mean * scale
    return scale, shift


# ---------------------------------------------------------------------------
# Kernel B: fused [GN-apply + Swish] -> 3x3 conv -> (nin / identity) residual,
# with optional fused emission of the next GroupNorm's partial statistics.
# Row-tiled with 1-row halos (clamped index maps, zero-masked at the border);
# column (dx) shifts via pltpu.roll + iota masks (reproducing zero W-padding).
# ---------------------------------------------------------------------------
def _fused_conv_kernel(*refs, shortcut, emit_stats, fold, th):
    if shortcut == "nin":
        (scale_ref, shift_ref, xt_ref, xc_ref, xb_ref, w_ref, b_ref,
         xs_ref, nw_ref, nb_ref) = refs[:10]
        out_refs = refs[10:]
    elif shortcut == "identity":
        (scale_ref, shift_ref, xt_ref, xc_ref, xb_ref, w_ref, b_ref,
         xs_ref) = refs[:8]
        out_refs = refs[8:]
    else:
        (scale_ref, shift_ref, xt_ref, xc_ref, xb_ref, w_ref, b_ref) = refs[:7]
        out_refs = refs[7:]
    o_ref = out_refs[0]
    stats_ref = out_refs[1] if emit_stats else None

    i = pl.program_id(1)
    last = pl.num_programs(1) - 1
    W = xc_ref.shape[2]
    Cin = xc_ref.shape[3]
    Cout = o_ref.shape[3]
    R = th + 2

    scale = scale_ref[0].astype(jnp.float32).reshape(1, 1, Cin)
    shift = shift_ref[0].astype(jnp.float32).reshape(1, 1, Cin)

    def gn_swish(v):                                     # v: (rows, W, Cin) bf16
        y = v.astype(jnp.float32) * scale + shift        # fused GroupNorm affine
        return y * jax.nn.sigmoid(y)                     # Swish (f32)

    h_c = gn_swish(xc_ref[0])                                            # (th, W, Cin)
    h_t = gn_swish(xt_ref[0]) * (i > 0).astype(jnp.float32)              # top halo row
    h_b = gn_swish(xb_ref[0]) * (i < last).astype(jnp.float32)           # bottom halo row
    rows = jnp.concatenate([h_t, h_c, h_b], axis=0)                      # (R, W, Cin) f32

    # Column (dx) taps: roll the row-flattened tile by +-1 sublane; pre-masking the
    # column that wraps across row boundaries reproduces the conv's zero W-padding.
    col = lax.broadcasted_iota(jnp.int32, (1, W, 1), 1)
    not_first = (col >= 1).astype(jnp.float32)           # kills column 0
    not_last = (col <= W - 2).astype(jnp.float32)        # kills column W-1

    mid = rows.reshape(R * W, Cin)
    left = pltpu.roll((rows * not_last).reshape(R * W, Cin), shift=1, axis=0)
    right = pltpu.roll((rows * not_first).reshape(R * W, Cin),
                       shift=R * W - 1, axis=0)

    if fold:
        # K-folded path (C % 128 == 0): one (R*W, 3*Cin) operand, 3 matmuls (K=3*Cin).
        cat = jnp.concatenate([left.astype(MATMUL_DTYPE),
                               mid.astype(MATMUL_DTYPE),
                               right.astype(MATMUL_DTYPE)], axis=-1)
        acc = jnp.dot(cat[0:th * W], w_ref[0], preferred_element_type=jnp.float32)
        for dy in (1, 2):
            acc = acc + jnp.dot(cat[dy * W:dy * W + th * W], w_ref[dy],
                                preferred_element_type=jnp.float32)
    else:
        # Fallback (unaligned channels): 9 matmuls with K=Cin.
        taps = (left.astype(MATMUL_DTYPE), mid.astype(MATMUL_DTYPE),
                right.astype(MATMUL_DTYPE))               # input column c-1, c, c+1
        acc = None
        for dy in range(3):                               # dy taps = free row slices
            for dx in range(3):
                a = taps[dx][dy * W:dy * W + th * W]
                p = jnp.dot(a, w_ref[dy * 3 + dx],
                            preferred_element_type=jnp.float32)
                acc = p if acc is None else acc + p

    acc = acc + b_ref[...].astype(jnp.float32)            # conv bias

    if emit_stats:
        # Fused gn2 partial statistics of h = conv1(x) + b (f32 accumulator, before
        # the bf16 store); avoids re-reading h from HBM for the second GroupNorm.
        s = jnp.sum(acc, axis=0, keepdims=True)
        ssq = jnp.sum(acc * acc, axis=0, keepdims=True)
        stats_ref[0, 0] = jnp.concatenate([s, ssq], axis=0)

    if shortcut == "nin":                                  # fused 1x1-conv shortcut
        xs = xs_ref[0].astype(MATMUL_DTYPE).reshape(th * W, xs_ref.shape[3])
        acc = acc + jnp.dot(xs, nw_ref[...], preferred_element_type=jnp.float32)
        acc = acc + nb_ref[...].astype(jnp.float32)
    elif shortcut == "identity":                           # fused residual add
        acc = acc + xs_ref[0].astype(jnp.float32).reshape(th * W, Cout)

    o_ref[0] = acc.reshape(th, W, Cout).astype(o_ref.dtype)


def fused_gn_swish_conv3x3(x_nhwc, scale, shift, w_oihw, b, *, th, out_dtype,
                           shortcut="none", emit_stats=False,
                           x_skip=None, nin_w=None, nin_b=None):
    B, H, W, Cin = x_nhwc.shape
    Cout = w_oihw.shape[0]
    assert H % th == 0
    nH = H // th
    fold = (Cin % 128 == 0)                               # vreg-aligned channel concat

    # (Cout, Cin, 3, 3) -> (kh, kw, Cin, Cout); fold (kw, Cin) into K when aligned.
    w_t = jnp.transpose(w_oihw, (2, 3, 1, 0))
    if fold:
        w_k = w_t.reshape(3, 3 * Cin, Cout).astype(MATMUL_DTYPE)
        w_spec = pl.BlockSpec((3, 3 * Cin, Cout), lambda bb, i: (0, 0, 0))
    else:
        w_k = w_t.reshape(9, Cin, Cout).astype(MATMUL_DTYPE)
        w_spec = pl.BlockSpec((9, Cin, Cout), lambda bb, i: (0, 0, 0))
    b2 = b.reshape(1, Cout).astype(jnp.float32)

    in_specs = [
        pl.BlockSpec((1, 1, Cin), lambda bb, i: (bb, 0, 0)),             # GN scale
        pl.BlockSpec((1, 1, Cin), lambda bb, i: (bb, 0, 0)),             # GN shift
        pl.BlockSpec((1, 1, W, Cin),                                     # top halo row
                     lambda bb, i: (bb, jnp.maximum(i * th - 1, 0), 0, 0)),
        pl.BlockSpec((1, th, W, Cin), lambda bb, i: (bb, i, 0, 0)),      # center rows
        pl.BlockSpec((1, 1, W, Cin),                                     # bottom halo row
                     lambda bb, i: (bb, jnp.minimum((i + 1) * th, H - 1), 0, 0)),
        w_spec,                                                          # conv weights
        pl.BlockSpec((1, Cout), lambda bb, i: (0, 0)),                   # conv bias
    ]
    args = [scale, shift, x_nhwc, x_nhwc, x_nhwc, w_k, b2]

    if shortcut == "nin":
        Cs = x_skip.shape[-1]
        nw = jnp.transpose(nin_w[:, :, 0, 0], (1, 0)).astype(MATMUL_DTYPE)
        nb = nin_b.reshape(1, Cout).astype(jnp.float32)
        in_specs += [
            pl.BlockSpec((1, th, W, Cs), lambda bb, i: (bb, i, 0, 0)),
            pl.BlockSpec((Cs, Cout), lambda bb, i: (0, 0)),
            pl.BlockSpec((1, Cout), lambda bb, i: (0, 0)),
        ]
        args += [x_skip, nw, nb]
    elif shortcut == "identity":
        in_specs += [pl.BlockSpec((1, th, W, Cout), lambda bb, i: (bb, i, 0, 0))]
        args += [x_skip]

    out_spec = pl.BlockSpec((1, th, W, Cout), lambda bb, i: (bb, i, 0, 0))
    out_shape = jax.ShapeDtypeStruct((B, H, W, Cout), out_dtype)
    if emit_stats:
        out_shape = (out_shape, jax.ShapeDtypeStruct((B, nH, 2, Cout), jnp.float32))
        out_specs = (out_spec,
                     pl.BlockSpec((1, 1, 2, Cout), lambda bb, i: (bb, i, 0, 0)))
    else:
        out_specs = out_spec

    kernel = functools.partial(_fused_conv_kernel, shortcut=shortcut,
                               emit_stats=emit_stats, fold=fold, th=th)
    return pl.pallas_call(
        kernel,
        out_shape=out_shape,
        grid_spec=pltpu.PrefetchScalarGridSpec(
            num_scalar_prefetch=0,
            grid=(B, nH),
            in_specs=in_specs,
            out_specs=out_specs,
        ),
        compiler_params=pltpu.CompilerParams(
            dimension_semantics=("parallel", "parallel"),
            vmem_limit_bytes=VMEM_LIMIT_BYTES),
    )(*args)


# ---------------------------------------------------------------------------
# Row-tile chooser: largest divisor of H whose conv working set fits the
# generation-aware budget AND keeps enough grid steps for 2 TensorCores.
# ---------------------------------------------------------------------------
def _est_tile_bytes(th, W, cin, cout, cskip, out_bytes):
    r = th + 2
    io = 2 * (r * W * cin * 2                  # input rows + halos (bf16, dbl-buffered)
              + th * W * cskip * 2             # shortcut tile (bf16, dbl-buffered)
              + th * W * cout * out_bytes)     # output tile (dbl-buffered)
    weights = 2 * ((9 * cin + cskip) * cout * 2 + 2 * cout * 4)   # conv + nin + bias
    tmp = (4 * r * W * cin * 4                 # f32 rows + masked + 2 rolled taps
           + 3 * r * W * cin * 2               # bf16 taps / folded operand
           + th * W * cout * 4)                # f32 MXU accumulator
    return io + weights + tmp


def _pick_tile_rows(H, W, cin, cout, out_bytes, budget_bytes, batch):
    def est(th):
        return max(_est_tile_bytes(th, W, cin, cout, 0, 2),          # conv1 (bf16 out)
                   _est_tile_bytes(th, W, cout, cout, cin, out_bytes))  # conv2 (+skip)

    def parallel_ok(th):
        n = H // th
        if batch * n < 4 <= batch * H:          # >= 4 grid steps (2 per v7x core)
            return False
        if (batch % 2 == 1) and n < 2 <= H:     # >= 2 row tiles when batch is odd/1
            return False
        return True

    divisors = [d for d in range(1, H + 1) if H % d == 0]
    fitting = [d for d in divisors if est(d) <= budget_bytes]
    good = [d for d in fitting if parallel_ok(d)]
    pool = good or fitting or [1]
    return max(pool)


# ---------------------------------------------------------------------------
# ResnetBlock forward.
# ---------------------------------------------------------------------------
def resnet_block_forward_nhwc(x, params, *, out_dtype=None, th=None):
    """NHWC entry point (use this when stacking blocks to stay NHWC/bf16 end-to-end)."""
    if out_dtype is None:
        out_dtype = x.dtype
    x = x.astype(ACT_DTYPE)
    B, H, W, Cin = x.shape
    Cout = params["conv1_w"].shape[0]
    if th is None:
        th = _pick_tile_rows(H, W, Cin, Cout, jnp.dtype(out_dtype).itemsize,
                             TILE_BUDGET_BYTES, B)
    assert H % th == 0

    # GroupNorm1: per-tile partial stats kernel + tiny jnp finalize.
    p1 = gn_partial_stats(x, th=th)
    sc1, sh1 = gn_scale_shift_from_partials(
        p1, params["gn1_gamma"], params["gn1_beta"],
        float(H * W * (Cin // NUM_GROUPS)))

    # conv1 with fused gn2 partial-stat emission (no HBM re-read of h for stats).
    h, p2 = fused_gn_swish_conv3x3(
        x, sc1, sh1, params["conv1_w"], params["conv1_b"],
        th=th, out_dtype=INTER_DTYPE, emit_stats=True)
    sc2, sh2 = gn_scale_shift_from_partials(
        p2, params["gn2_gamma"], params["gn2_beta"],
        float(H * W * (Cout // NUM_GROUPS)))

    if "nin_w" in params:                                   # Cin != Cout
        out = fused_gn_swish_conv3x3(
            h, sc2, sh2, params["conv2_w"], params["conv2_b"], th=th,
            out_dtype=out_dtype, shortcut="nin", x_skip=x,
            nin_w=params["nin_w"], nin_b=params["nin_b"])
    else:                                                   # identity shortcut
        out = fused_gn_swish_conv3x3(
            h, sc2, sh2, params["conv2_w"], params["conv2_b"], th=th,
            out_dtype=out_dtype, shortcut="identity", x_skip=x)
    return out


def resnet_block_forward(x_nchw, params, *, th=None):
    """PyTorch-compatible NCHW interface; bf16 cast fused into the layout transpose."""
    out_dtype = x_nchw.dtype
    x = jnp.transpose(x_nchw, (0, 2, 3, 1)).astype(ACT_DTYPE)   # NCHW -> NHWC (+cast)
    out = resnet_block_forward_nhwc(x, params, out_dtype=out_dtype, th=th)
    return jnp.transpose(out, (0, 3, 1, 2))                     # NHWC -> NCHW


# ---------------------------------------------------------------------------
# Pure-JAX reference (NCHW, torch.nn semantics, f32) for verification.
# ---------------------------------------------------------------------------
def _ref_group_norm(x, gamma, beta):
    B, C, H, W = x.shape
    xg = x.reshape(B, NUM_GROUPS, C // NUM_GROUPS, H, W)
    mean = jnp.mean(xg, axis=(2, 3, 4), keepdims=True)
    var = jnp.mean((xg - mean) ** 2, axis=(2, 3, 4), keepdims=True)
    xn = ((xg - mean) / jnp.sqrt(var + EPS)).reshape(B, C, H, W)
    return xn * gamma[None, :, None, None] + beta[None, :, None, None]


def _ref_conv(x, w, b, pad):
    y = lax.conv_general_dilated(x, w, (1, 1), [(pad, pad), (pad, pad)],
                                 dimension_numbers=("NCHW", "OIHW", "NCHW"))
    return y + b[None, :, None, None]


def _ref_forward(x, params):
    h = _ref_group_norm(x, params["gn1_gamma"], params["gn1_beta"])
    h = h * jax.nn.sigmoid(h)
    h = _ref_conv(h, params["conv1_w"], params["conv1_b"], 1)
    h = _ref_group_norm(h, params["gn2_gamma"], params["gn2_beta"])
    h = h * jax.nn.sigmoid(h)
    h = _ref_conv(h, params["conv2_w"], params["conv2_b"], 1)
    if "nin_w" in params:
        sc = _ref_conv(x, params["nin_w"], params["nin_b"], 0)
    else:
        sc = x
    return sc + h


def _make_params(key, c_in, c_out, with_nin):
    ks = jax.random.split(key, 10)
    p = {
        "gn1_gamma": 1.0 + 0.1 * jax.random.normal(ks[0], (c_in,), jnp.float32),
        "gn1_beta": 0.1 * jax.random.normal(ks[1], (c_in,), jnp.float32),
        "conv1_w": jax.random.normal(ks[2], (c_out, c_in, 3, 3), jnp.float32)
        / jnp.sqrt(9.0 * c_in),
        "conv1_b": 0.1 * jax.random.normal(ks[3], (c_out,), jnp.float32),
        "gn2_gamma": 1.0 + 0.1 * jax.random.normal(ks[4], (c_out,), jnp.float32),
        "gn2_beta": 0.1 * jax.random.normal(ks[5], (c_out,), jnp.float32),
        "conv2_w": jax.random.normal(ks[6], (c_out, c_out, 3, 3), jnp.float32)
        / jnp.sqrt(9.0 * c_out),
        "conv2_b": 0.1 * jax.random.normal(ks[7], (c_out,), jnp.float32),
    }
    if with_nin:
        p["nin_w"] = (jax.random.normal(ks[8], (c_out, c_in, 1, 1), jnp.float32)
                      / jnp.sqrt(1.0 * c_in))
        p["nin_b"] = 0.1 * jax.random.normal(ks[9], (c_out,), jnp.float32)
    return p


if __name__ == "__main__":
    key = jax.random.PRNGKey(0)
    k_p1, k_p2, k_p3, k_x1, k_x2, k_x3 = jax.random.split(key, 6)

    def check(out, ref, tag):
        out = out.astype(jnp.float32)
        ref = ref.astype(jnp.float32)
        max_err = float(jnp.max(jnp.abs(out - ref)))
        rel_l2 = float(jnp.linalg.norm(out - ref) / (jnp.linalg.norm(ref) + 1e-12))
        # bf16 activations / MXU operands vs an f32 reference.
        assert max_err < 0.15 and rel_l2 < 2.5e-2, (tag, max_err, rel_l2)

    B, H, W = 2, 16, 16

    # Case 1: Cin != Cout -> fused nin (1x1 conv) shortcut; unaligned-channel
    # fallback conv path. Test auto tile choice and forced 4-row tiles (halos).
    C_IN, C_OUT = 32, 64
    params1 = _make_params(k_p1, C_IN, C_OUT, with_nin=True)
    x1 = jax.random.normal(k_x1, (B, C_IN, H, W), jnp.float32)
    ref1 = _ref_forward(x1, params1)
    for th in (None, 4):
        out1 = jax.block_until_ready(resnet_block_forward(x1, params1, th=th))
        assert out1.shape == (B, C_OUT, H, W), out1.shape
        check(out1, ref1, ("nin", th))

    # Case 2: Cin == Cout -> fused identity residual.
    params2 = _make_params(k_p2, 32, 32, with_nin=False)
    x2 = jax.random.normal(k_x2, (B, 32, H, W), jnp.float32)
    ref2 = _ref_forward(x2, params2)
    out2 = jax.block_until_ready(resnet_block_forward(x2, params2, th=8))
    assert out2.shape == (B, 32, H, W), out2.shape
    check(out2, ref2, "identity")

    # Case 3: 128-channel identity block -> exercises the folded-K (3-matmul,
    # K=3*Cin) MXU path used for realistic VQ-GAN channel counts.
    params3 = _make_params(k_p3, 128, 128, with_nin=False)
    x3 = jax.random.normal(k_x3, (2, 128, 8, 8), jnp.float32)
    ref3 = _ref_forward(x3, params3)
    out3 = jax.block_until_ready(resnet_block_forward(x3, params3))
    assert out3.shape == (2, 128, 8, 8), out3.shape
    check(out3, ref3, "folded")

    print("KERNEL_OK")
</pallas_src>

<mosaic_0001>
module attributes {stable_mosaic.version = 11 : i64} {
  func.func @_gn_partial_stats_kernel(%arg0: i32, %arg1: i32, %arg2: memref<1x8x16x32xbf16, #tpu.memory_space<vmem>>, %arg3: memref<1x1x2x32xf32, #tpu.memory_space<vmem>>) attributes {dimension_semantics = [#tpu.dimension_semantics<parallel>, #tpu.dimension_semantics<parallel>], iteration_bounds = array<i64: 2, 2>, scalar_prefetch = 0 : i64, scratch_operands = 0 : i64, tpu.core_type = #tpu.core_type<tc>, window_params = [{transform_indices = @transform_0, window_bounds = array<i64: 1, 8, 16, 32>}, {transform_indices = @transform_1, window_bounds = array<i64: 1, 1, 2, 32>}]} {
    %c0 = arith.constant 0 : index
    %c0_0 = arith.constant 0 : index
    %c0_1 = arith.constant 0 : index
    %c0_2 = arith.constant 0 : index
    %0 = vector.load %arg2[%c0, %c0_0, %c0_1, %c0_2] : memref<1x8x16x32xbf16, #tpu.memory_space<vmem>>, vector<1x8x16x32xbf16>
    %1 = vector.shape_cast %0 : vector<1x8x16x32xbf16> to vector<8x16x32xbf16>
    %2 = arith.extf %1 : vector<8x16x32xbf16> to vector<8x16x32xf32>
    %3 = vector.shape_cast %2 : vector<8x16x32xf32> to vector<128x32xf32>
    %cst = arith.constant dense<0.000000e+00> : vector<32xf32>
    %4 = vector.multi_reduction <add>, %3, %cst [0] : vector<128x32xf32> to vector<32xf32>
    %5 = vector.shape_cast %4 : vector<32xf32> to vector<1x32xf32>
    %6 = arith.mulf %3, %3 : vector<128x32xf32>
    %cst_3 = arith.constant dense<0.000000e+00> : vector<32xf32>
    %7 = vector.multi_reduction <add>, %6, %cst_3 [0] : vector<128x32xf32> to vector<32xf32>
    %8 = vector.shape_cast %7 : vector<32xf32> to vector<1x32xf32>
    %9 = tpu.concatenate %5, %8 in 0 : vector<1x32xf32>, vector<1x32xf32> -> vector<2x32xf32>
    %c0_4 = arith.constant 0 : index
    %c0_5 = arith.constant 0 : index
    %c0_6 = arith.constant 0 : index
    %c0_7 = arith.constant 0 : index
    %10 = vector.load %arg3[%c0_4, %c0_5, %c0_6, %c0_7] : memref<1x1x2x32xf32, #tpu.memory_space<vmem>>, vector<1x1x2x32xf32>
    %11 = vector.shape_cast %10 : vector<1x1x2x32xf32> to vector<2x32xf32>
    %12 = vector.shape_cast %9 : vector<2x32xf32> to vector<1x1x2x32xf32>
    tpu.vector_store %arg3[%c0_4, %c0_5, %c0_6, %c0_7], %12 {strides = array<i32>} : memref<1x1x2x32xf32, #tpu.memory_space<vmem>>, vector<1x1x2x32xf32>,
    return
  }
  func.func @transform_0(%arg0: i32, %arg1: i32) -> (i32, i32, i32, i32) {
    %c0_i32 = arith.constant 0 : i32
    %c0_i32_0 = arith.constant 0 : i32
    %c0_i32_1 = arith.constant 0 : i32
    return %arg0, %arg1, %c0_i32, %c0_i32_0 : i32, i32, i32, i32
  }
  func.func @transform_1(%arg0: i32, %arg1: i32) -> (i32, i32, i32, i32) {
    %c0_i32 = arith.constant 0 : i32
    %c0_i32_0 = arith.constant 0 : i32
    %c0_i32_1 = arith.constant 0 : i32
    return %arg0, %arg1, %c0_i32, %c0_i32_0 : i32, i32, i32, i32
  }
}

</mosaic_0001>

<llo_original>
// kernel: tpu_custom_call.1
$region0: #{tpu_custom_call.1}
  #allocation0 [shape = 'u32[]', space=smem, size = 0x4, offset = 0x4, fixed_abs, tag = 'smem constant byte address 0x4 - core index']
  #allocation1 [shape = 'u32[144,128]{1,0:T(1,128)}', space=vmem, size = 0x12000, scoped, tag = 'internal scratch']
  %s0 = inlined_call_operand.hbm [shape: bf16[2,16,16,32], index: 0, kind: input, shape index: {}]
  %s1 = inlined_call_operand.hbm [shape: f32[2,2,2,32], index: 1, kind: output, shape index: {}]
  %s2 = sld [smem:[#allocation0]]
  $region41: #{tpu_custom_call.1} parent=0
    _
  %s4 = ssub.s32 1, %s2
  %s5 = scalar_select 0, %s4, %s2
  $region1: #{tpu_custom_call.1} parent=0
    #allocation2 [shape = 'u8[65536]{0}', space=vmem, size = 0x10000, scoped, tag = 'input window, operand 0']
    #allocation3 [shape = 's32[2]{0}', space=sflag, size = 0x8, scoped, tag = 'scoped memory for tpu_custom_call.1']
    #allocation4 [shape = 's32[2]{0}', space=sflag, size = 0x8, scoped, tag = 'scoped memory for tpu_custom_call.1']
    #allocation5 [shape = 'u8[2048]{0}', space=vmem, size = 0x800, scoped, tag = 'output window, operand 0']
    %6 = vsyncpa [#allocation3], 0
    %s7 = scalar_lea.sflag [#allocation3], 1
    %8 = vsyncpa %s7, 0
    %9 = vsyncpa [#allocation4], 0
    %s10 = scalar_lea.sflag [#allocation4], 1
    %11 = vsyncpa %s10, 0
    loop: start=0, step=1, limit=6
    $region2: #{tpu_custom_call.1} parent=1 // loop_pre_header
      _
    $region3: #{tpu_custom_call.1} parent=1 // loop_header
      %s13 = sphi 0, %s17
      %p14 = scmp.ge.s32.totalorder %s13, 6
      %s20 = sphi 0, %s32
      %s21 = sphi 0, %s28
      %s22 = sphi 0, %s20
      %s23 = sphi 0, %s21
      %s24 = sphi 0, %s22
      %s25 = sphi 0, %s23
      %s37 = sphi 0, %s39
      %s40 = sphi 0, %s37
      %s41 = sphi 0, %s40
      %s57 = sphi 0, %s41
      %s65 = sphi 0, %s67
      %s68 = sphi 0, %s65
      %s69 = sphi 0, %s68
      %s85 = sphi 0, %s69
    $region4: #{tpu_custom_call.1} parent=1 // loop_header_branch
      %16 = sbr.rel (%p14) target = $region8
    $region5: #{tpu_custom_call.1} parent=1 // loop_body
      %s18 = ssub.s32 %s13, 1
      %s19 = ssub.s32 %s13, 2
      %s26 = sadd.s32 1, %s21
      %p27 = scmp.ge.s32.totalorder %s26, 2
      %s28 = scalar_select %p27, 0, %s26
      %s29 = sadd.s32 1, %s20
      %s30 = scalar_select %p27, %s29, %s20
      %p31 = scmp.ge.s32.totalorder %s30, 2
      %s32 = scalar_select %p31, 0, %s30
      %s33 = ssub.s32 %s20, %s32
      %s34 = ssub.s32 %s21, %s28
      %s35 = sor.u32 %s33, %s34
      %p36 = scmp.eq.s32.totalorder %s35, 0
      %s38 = sadd.s32 %s37, 1
      %s39 = scalar_select %p36, %s37, %s38
      %p42 = pneg %p36
      %p43 = scmp.eq.s32.totalorder %s13, 3
      %p44 = por %p42, %p43
      %p45 = scmp.ne.s32.totalorder %s37, %s40
      %p46 = scmp.eq.s32.totalorder %s13, 0
      %p47 = por %p45, %p46
      %p48 = scmp.ne.s32.totalorder %s37, %s40
      %p49 = scmp.eq.s32.totalorder %s18, 3
      %p50 = por %p48, %p49
      %p51 = scmp.ne.s32.totalorder %s40, %s41
      %p52 = scmp.eq.s32.totalorder %s18, 0
      %p53 = por %p51, %p52
      %p54 = scmp.ne.s32.totalorder %s40, %s41
      %p55 = scmp.eq.s32.totalorder %s19, 3
      %p56 = por %p54, %p55
      %p58 = scmp.ne.s32.totalorder %s41, %s57
      %p59 = scmp.eq.s32.totalorder %s19, 0
      %p60 = por %p58, %p59
      %s61 = ssub.s32 %s20, %s32
      %s62 = ssub.s32 %s21, %s28
      %s63 = sor.u32 %s61, %s62
      %p64 = scmp.eq.s32.totalorder %s63, 0
      %s66 = sadd.s32 %s65, 1
      %s67 = scalar_select %p64, %s65, %s66
      %p70 = pneg %p64
      %p71 = scmp.eq.s32.totalorder %s13, 3
      %p72 = por %p70, %p71
      %p73 = scmp.ne.s32.totalorder %s65, %s68
      %p74 = scmp.eq.s32.totalorder %s13, 0
      %p75 = por %p73, %p74
      %p76 = scmp.ne.s32.totalorder %s65, %s68
      %p77 = scmp.eq.s32.totalorder %s18, 3
      %p78 = por %p76, %p77
      %p79 = scmp.ne.s32.totalorder %s68, %s69
      %p80 = scmp.eq.s32.totalorder %s18, 0
      %p81 = por %p79, %p80
      %p82 = scmp.ne.s32.totalorder %s68, %s69
      %p83 = scmp.eq.s32.totalorder %s19, 3
      %p84 = por %p82, %p83
      %p86 = scmp.ne.s32.totalorder %s69, %s85
      %p87 = scmp.eq.s32.totalorder %s19, 0
      %p88 = por %p86, %p87
      %p89 = scmp.le.s32.totalorder 1, %s13
      %p90 = scmp.lt.s32.totalorder %s13, 5
      %p91 = pnand %p89, %p90
      %p92 = pneg %p91
      // Predicated region
      $region9: #{tpu_custom_call.1} parent=5 // pred_check
        _
      $region10: #{tpu_custom_call.1} parent=5 // pred_check_branch
        %94 = sbr.rel (%p91) target = $region12
      $region11: #{tpu_custom_call.1} parent=5 // pred_region
        %s95 = ssub.s32 %s13, 1
      $region12: #{tpu_custom_call.1} parent=5 // pred_fallthru
        _
      %p96 = scmp.lt.s32.totalorder %s13, 4
      // Predicated region
      $region13: #{tpu_custom_call.1} parent=5 // pred_check
        %p97 = pneg %p96
      $region14: #{tpu_custom_call.1} parent=5 // pred_check_branch
        %99 = sbr.rel (%p97) target = $region16
      $region15: #{tpu_custom_call.1} parent=5 // pred_region
        // Predicated region
        $region17: #{tpu_custom_call.1} parent=15 // pred_check
          %p100 = pneg %p47
        $region18: #{tpu_custom_call.1} parent=15 // pred_check_branch
          %102 = sbr.rel (%p100) target = $region20
        $region19: #{tpu_custom_call.1} parent=15 // pred_region
          %s103 = sand.u32 %s37, 1
          %s104 = scalar_lea.sflag [#allocation3], %s103
          %s105 = sand.u32 %s37, 1
          %s106 = smul.addr %s105, 64
          %s107 = scalar_lea.vmem [#allocation2], %s106
          %s108 = smul.u32 8, %s21
          %s110 = ssub.s32 1024, 1024
          %111 = vsyncadd %s104, %s110
          %s112 = smul.addr %s108, 2
          %s113 = smul.addr %s20, 32
          %s114 = sadd.s32 %s112, %s113
          %s115 = smul.addr %s114, 64
          %s116 = scalar_lea.hbm %s0, %s115
          %s117 = sshll.u32 %s107, 4
          %s118 = int_to_ptr.vmem [resolvable:$true] %s117
          %123 = dma.hbm_to_vmem [thread:$0]  %s116, 1024, %s118, %s104, 64, 64, 4
        $region20: #{tpu_custom_call.1} parent=15 // pred_fallthru
          _
      $region16: #{tpu_custom_call.1} parent=5 // pred_fallthru
        _
      %p124 = scmp.le.s32.totalorder 1, %s13
      %p125 = scmp.lt.s32.totalorder %s13, 5
      %p126 = pnand %p124, %p125
      %p127 = pneg %p126
      // Predicated region
      $region21: #{tpu_custom_call.1} parent=5 // pred_check
        _
      $region22: #{tpu_custom_call.1} parent=5 // pred_check_branch
        %129 = sbr.rel (%p126) target = $region24
      $region23: #{tpu_custom_call.1} parent=5 // pred_region
        %s130 = ssub.s32 %s13, 1
        %s131 = sand.u32 %s40, 1
        %s132 = scalar_lea.sflag [#allocation3], %s131
        %s133 = sand.u32 %s40, 1
        %s134 = smul.addr %s133, 64
        %s135 = scalar_lea.vmem [#allocation2], %s134
        // Predicated region
        $region25: #{tpu_custom_call.1} parent=23 // pred_check
          %p136 = pneg %p53
        $region26: #{tpu_custom_call.1} parent=23 // pred_check_branch
          %138 = sbr.rel (%p136) target = $region28
        $region27: #{tpu_custom_call.1} parent=23 // pred_region
          %139 = dma.done %s132, 1024
        $region28: #{tpu_custom_call.1} parent=23 // pred_fallthru
          _
        %s140 = sand.u32 %s40, 1
        %s141 = scalar_lea.sflag [#allocation3], %s140
        %s142 = sand.u32 %s40, 1
        %s143 = smul.addr %s142, 64
        %s144 = scalar_lea.vmem [#allocation2], %s143
        %p145 = pneg %p53
        %p146 = pneg %p50
        %p147 = pneg %p81
        %p148 = pneg %p78
        %s149 = sand.u32 %s68, 1
        %s150 = scalar_lea.sflag [#allocation4], %s149
        %s151 = sand.u32 %s68, 1
        %s152 = smul.addr %s151, 2
        %s153 = scalar_lea.vmem [#allocation5], %s152
        %s154 = smul.u32 8, %s23
        %v155 = vld [vmem:[%s135] sm:$0xf]
        %v156 = vld [vmem:[%s135 + $0x4] sm:$0xf]
        %v157 = vld [vmem:[%s135 + $0x8] sm:$0xf]
        %v158 = vld [vmem:[%s135 + $0xc] sm:$0xf]
        %v159 = vld [vmem:[%s135 + $0x10] sm:$0xf]
        %v160 = vld [vmem:[%s135 + $0x14] sm:$0xf]
        %v161 = vld [vmem:[%s135 + $0x18] sm:$0xf]
        %v162 = vld [vmem:[%s135 + $0x1c] sm:$0xf]
        %v163 = vld [vmem:[%s135 + $0x20] sm:$0xf]
        %v164 = vld [vmem:[%s135 + $0x24] sm:$0xf]
        %v165 = vld [vmem:[%s135 + $0x28] sm:$0xf]
        %v166 = vld [vmem:[%s135 + $0x2c] sm:$0xf]
        %v167 = vld [vmem:[%s135 + $0x30] sm:$0xf]
        %v168 = vld [vmem:[%s135 + $0x34] sm:$0xf]
        %v169 = vld [vmem:[%s135 + $0x38] sm:$0xf]
        %v170 = vld [vmem:[%s135 + $0x3c] sm:$0xf]
        %v171 = vunpack.c.l.bf16 %v155
        %v172 = vunpack.c.l.bf16 %v156
        %v173 = vunpack.c.l.bf16 %v157
        %v174 = vunpack.c.l.bf16 %v158
        %v175 = vunpack.c.l.bf16 %v159
        %v176 = vunpack.c.l.bf16 %v160
        %v177 = vunpack.c.l.bf16 %v161
        %v178 = vunpack.c.l.bf16 %v162
        %v179 = vunpack.c.l.bf16 %v163
        %v180 = vunpack.c.l.bf16 %v164
        %v181 = vunpack.c.l.bf16 %v165
        %v182 = vunpack.c.l.bf16 %v166
        %v183 = vunpack.c.l.bf16 %v167
        %v184 = vunpack.c.l.bf16 %v168
        %v185 = vunpack.c.l.bf16 %v169
        %v186 = vunpack.c.l.bf16 %v170
        %vm187 = vcmask 261120
        %v188 = vsel %vm187, %v171, 0.0
        %v189 = vsel %vm187, %v172, 0.0
        %v190 = vadd.f32 %v188, %v189
        %v191 = vsel %vm187, %v173, 0.0
        %v192 = vadd.f32 %v190, %v191
        %v193 = vsel %vm187, %v174, 0.0
        %v194 = vadd.f32 %v192, %v193
        %v195 = vsel %vm187, %v175, 0.0
        %v196 = vadd.f32 %v194, %v195
        %v197 = vsel %vm187, %v176, 0.0
        %v198 = vadd.f32 %v196, %v197
        %v199 = vsel %vm187, %v177, 0.0
        %v200 = vadd.f32 %v198, %v199
        %v201 = vsel %vm187, %v178, 0.0
        %v202 = vadd.f32 %v200, %v201
        %v203 = vsel %vm187, %v179, 0.0
        %v204 = vadd.f32 %v202, %v203
        %v205 = vsel %vm187, %v180, 0.0
        %v206 = vadd.f32 %v204, %v205
        %v207 = vsel %vm187, %v181, 0.0
        %v208 = vadd.f32 %v206, %v207
        %v209 = vsel %vm187, %v182, 0.0
        %v210 = vadd.f32 %v208, %v209
        %v211 = vsel %vm187, %v183, 0.0
        %v212 = vadd.f32 %v210, %v211
        %v213 = vsel %vm187, %v184, 0.0
        %v214 = vadd.f32 %v212, %v213
        %v215 = vsel %vm187, %v185, 0.0
        %v216 = vadd.f32 %v214, %v215
        %v217 = vsel %vm187, %v186, 0.0
        %v218 = vadd.f32 %v216, %v217
        %v219 = vrot.slane %v218, 4
        %v220 = vadd.f32 %v218, %v219
        %v221 = vrot.slane %v220, 2
        %v222 = vadd.f32 %v220, %v221
        %v223 = vrot.slane %v222, 1
        %v224 = vadd.f32 %v222, %v223
        %v225 = vmul.f32 %v171, %v171
        %v226 = vmul.f32 %v172, %v172
        %v227 = vmul.f32 %v173, %v173
        %v228 = vmul.f32 %v174, %v174
        %v229 = vmul.f32 %v175, %v175
        %v230 = vmul.f32 %v176, %v176
        %v231 = vmul.f32 %v177, %v177
        %v232 = vmul.f32 %v178, %v178
        %v233 = vmul.f32 %v179, %v179
        %v234 = vmul.f32 %v180, %v180
        %v235 = vmul.f32 %v181, %v181
        %v236 = vmul.f32 %v182, %v182
        %v237 = vmul.f32 %v183, %v183
        %v238 = vmul.f32 %v184, %v184
        %v239 = vmul.f32 %v185, %v185
        %v240 = vmul.f32 %v186, %v186
        %v241 = vsel %vm187, %v225, 0.0
        %v242 = vsel %vm187, %v226, 0.0
        %v243 = vadd.f32 %v241, %v242
        %v244 = vsel %vm187, %v227, 0.0
        %v245 = vadd.f32 %v243, %v244
        %v246 = vsel %vm187, %v228, 0.0
        %v247 = vadd.f32 %v245, %v246
        %v248 = vsel %vm187, %v229, 0.0
        %v249 = vadd.f32 %v247, %v248
        %v250 = vsel %vm187, %v230, 0.0
        %v251 = vadd.f32 %v249, %v250
        %v252 = vsel %vm187, %v231, 0.0
        %v253 = vadd.f32 %v251, %v252
        %v254 = vsel %vm187, %v232, 0.0
        %v255 = vadd.f32 %v253, %v254
        %v256 = vsel %vm187, %v233, 0.0
        %v257 = vadd.f32 %v255, %v256
        %v258 = vsel %vm187, %v234, 0.0
        %v259 = vadd.f32 %v257, %v258
        %v260 = vsel %vm187, %v235, 0.0
        %v261 = vadd.f32 %v259, %v260
        %v262 = vsel %vm187, %v236, 0.0
        %v263 = vadd.f32 %v261, %v262
        %v264 = vsel %vm187, %v237, 0.0
        %v265 = vadd.f32 %v263, %v264
        %v266 = vsel %vm187, %v238, 0.0
        %v267 = vadd.f32 %v265, %v266
        %v268 = vsel %vm187, %v239, 0.0
        %v269 = vadd.f32 %v267, %v268
        %v270 = vsel %vm187, %v240, 0.0
        %v271 = vadd.f32 %v269, %v270
        %v272 = vrot.slane %v271, 4
        %v273 = vadd.f32 %v271, %v272
        %v274 = vrot.slane %v273, 2
        %v275 = vadd.f32 %v273, %v274
        %v276 = vrot.slane %v275, 1
        %v277 = vadd.f32 %v275, %v276
        %vm278 = vcmask 1040384
        %v279 = vsel %vm278, %v224, %v277
        %vm280 = vcmask 254976
        %281 = vst.msk [vmem:[%s153] sm:$0x3] %vm280, %v279
        %s282 = sand.u32 %s68, 1
        %s283 = scalar_lea.sflag [#allocation4], %s282
        %s284 = sand.u32 %s68, 1
        %s285 = smul.addr %s284, 2
        %s286 = scalar_lea.vmem [#allocation5], %s285
        // Predicated region
        $region29: #{tpu_custom_call.1} parent=23 // pred_check
          %p287 = pneg %p78
        $region30: #{tpu_custom_call.1} parent=23 // pred_check_branch
          %289 = sbr.rel (%p287) target = $region32
        $region31: #{tpu_custom_call.1} parent=23 // pred_region
          %s291 = ssub.s32 32, 32
          %292 = vsyncadd %s283, %s291
          %s293 = smul.addr %s22, 2
          %s294 = sadd.s32 %s23, %s293
          %s295 = smul.addr %s294, 32
          %s296 = scalar_lea.hbm %s1, %s295
          %s298 = sshll.u32 %s286, 4
          %s299 = int_to_ptr.vmem [resolvable:$true] %s298
          %301 = dma.vmem_to_hbm [thread:$0]  %s299, 32, %s296, %s283
        $region32: #{tpu_custom_call.1} parent=23 // pred_fallthru
          _
      $region24: #{tpu_custom_call.1} parent=5 // pred_fallthru
        _
      %p302 = scmp.le.s32.totalorder 2, %s13
      // Predicated region
      $region33: #{tpu_custom_call.1} parent=5 // pred_check
        %p303 = pneg %p302
      $region34: #{tpu_custom_call.1} parent=5 // pred_check_branch
        %305 = sbr.rel (%p303) target = $region36
      $region35: #{tpu_custom_call.1} parent=5 // pred_region
        %s306 = ssub.s32 %s13, 2
        // Predicated region
        $region37: #{tpu_custom_call.1} parent=35 // pred_check
          %p307 = pneg %p84
        $region38: #{tpu_custom_call.1} parent=35 // pred_check_branch
          %309 = sbr.rel (%p307) target = $region40
        $region39: #{tpu_custom_call.1} parent=35 // pred_region
          %s310 = sand.u32 %s69, 1
          %s311 = scalar_lea.sflag [#allocation4], %s310
          %s312 = sand.u32 %s69, 1
          %s313 = smul.addr %s312, 2
          %s314 = scalar_lea.vmem [#allocation5], %s313
          %315 = dma.done %s311, 32
        $region40: #{tpu_custom_call.1} parent=35 // pred_fallthru
          _
      $region36: #{tpu_custom_call.1} parent=5 // pred_fallthru
        _
    $region6: #{tpu_custom_call.1} parent=1 // loop_footer
      %s17 = sadd.s32 1, %s13
    $region7: #{tpu_custom_call.1} parent=1 // loop_footer_branch
      %12 = sbr.rel target = $region3
    $region8: #{tpu_custom_call.1} parent=1 // loop_exit
      _
    %316 = vsyncpa [#allocation3], 1
    %s317 = scalar_lea.sflag [#allocation3], 1
    %318 = vsyncpa %s317, 1
    %319 = vsyncpa [#allocation4], 1
    %s320 = scalar_lea.sflag [#allocation4], 1
    %321 = vsyncpa %s320, 1

</llo_original>
